<compile_context>
chip_gen: v7x
topology: tpu7x:2x2x1
jax: 0.10.0
libtpu: 0.0.40
codegen_flags: <defaults>
</compile_context>

<pallas_src>
import jax
import jax.numpy as jnp
from jax.experimental import pallas as pl
from jax.experimental.pallas import tpu as pltpu

_LANE_CHOICES = (512, 256, 128)
_TARGET_BLOCK_BYTES = 2 * 1024 * 1024  # ~2 MiB per input block


def _double_log_kernel(x_ref, o_ref):
    # Upcast keeps the transcendentals on the f32 EUP path (v5e has no bf16
    # EUP); this is a no-op for f32 inputs.
    x = x_ref[...].astype(jnp.float32)
    o_ref[...] = jnp.log(jnp.log(x)).astype(o_ref.dtype)


def double_log(a: jax.Array) -> jax.Array:
    """Computes log(log(a)) elementwise, matching SimpleLogModule.forward."""
    orig_shape = a.shape
    # torch.log promotes integer inputs to floating point.
    if not jnp.issubdtype(a.dtype, jnp.floating):
        a = a.astype(jnp.float32)
    dtype = a.dtype
    n = a.size
    itemsize = jnp.dtype(dtype).itemsize

    # Widest lane width that divides the element count -> copy-free reshape
    # (no pad, no tail slice, no extra HBM passes).
    lanes = None
    for cand in _LANE_CHOICES:
        if n % cand == 0:
            lanes = cand
            break

    flat = a.reshape(-1)
    if lanes is None:
        # TODO(synk): ragged (n % 128 != 0) fallback pads in the wrapper; an
        # in-kernel lane-masked store on the last block would avoid this pass.
        lanes = 128
        padded_n = pl.cdiv(n, lanes) * lanes
        flat = jnp.pad(flat, (0, padded_n - n),
                       constant_values=jnp.asarray(1.0, dtype))
    rows = flat.size // lanes
    x2d = flat.reshape(rows, lanes)

    # ~2 MiB input block; always a multiple of 8 (and 16/32 for packed dtypes)
    # rows, so the block shape satisfies the (8, 128) tiling constraint.
    tile_rows = max(8, (_TARGET_BLOCK_BYTES // itemsize) // lanes)
    block_rows = min(rows, tile_rows)      # full-array block if it fits
    grid = (pl.cdiv(rows, block_rows),)    # partial last block: stores masked

    out2d = pl.pallas_call(
        _double_log_kernel,
        out_shape=jax.ShapeDtypeStruct((rows, lanes), dtype),
        grid_spec=pltpu.PrefetchScalarGridSpec(
            num_scalar_prefetch=0,
            grid=grid,
            in_specs=[pl.BlockSpec((block_rows, lanes), lambda i: (i, 0))],
            out_specs=pl.BlockSpec((block_rows, lanes), lambda i: (i, 0)),
        ),
        compiler_params=pltpu.CompilerParams(
            dimension_semantics=("parallel",),  # lets v7x use both TCs
        ),
    )(x2d)

    out = out2d.reshape(-1)
    if out.size != n:          # only the ragged fallback path
        out = out[:n]
    return out.reshape(orig_shape)


if __name__ == "__main__":
    key = jax.random.PRNGKey(0)
    k1, k2, k3 = jax.random.split(key, 3)

    # NCHW input like the PyTorch test; values > 1 so log(log(a)) is finite.
    x = jax.random.uniform(k1, (2, 4, 16, 16), dtype=jnp.float32,
                           minval=1.5, maxval=5.0)
    out = jax.block_until_ready(double_log(x))
    ref = jnp.log(jnp.log(x))
    assert out.shape == x.shape and out.dtype == x.dtype
    assert jnp.allclose(out, ref, rtol=1e-6, atol=1e-6)

    # Exercise the multi-block path (grid of 2, partial last block).
    y = jax.random.uniform(k2, (4, 8, 128, 129), dtype=jnp.float32,
                           minval=1.5, maxval=5.0)
    out_y = jax.block_until_ready(double_log(y))
    assert jnp.allclose(out_y, jnp.log(jnp.log(y)), rtol=1e-6, atol=1e-6)

    # Exercise the ragged (pad) fallback path.
    z = jax.random.uniform(k3, (3, 5, 7, 11), dtype=jnp.float32,
                           minval=1.5, maxval=5.0)
    out_z = jax.block_until_ready(double_log(z))
    assert jnp.allclose(out_z, jnp.log(jnp.log(z)), rtol=1e-6, atol=1e-6)

    print("KERNEL_OK")
</pallas_src>

<mosaic_0001>
module attributes {stable_mosaic.version = 11 : i64} {
  func.func @_double_log_kernel(%arg0: i32, %arg1: memref<4x512xf32, #tpu.memory_space<vmem>>, %arg2: memref<4x512xf32, #tpu.memory_space<vmem>>) attributes {dimension_semantics = [#tpu.dimension_semantics<parallel>], iteration_bounds = array<i64: 1>, scalar_prefetch = 0 : i64, scratch_operands = 0 : i64, tpu.core_type = #tpu.core_type<tc>, window_params = [{transform_indices = @transform_0, window_bounds = array<i64: 4, 512>}, {transform_indices = @transform_1, window_bounds = array<i64: 4, 512>}]} {
    %c0 = arith.constant 0 : index
    %c0_0 = arith.constant 0 : index
    %0 = vector.load %arg1[%c0, %c0_0] : memref<4x512xf32, #tpu.memory_space<vmem>>, vector<4x512xf32>
    %1 = math.log %0 : vector<4x512xf32>
    %2 = math.log %1 : vector<4x512xf32>
    %c0_1 = arith.constant 0 : index
    %c0_2 = arith.constant 0 : index
    %3 = vector.load %arg2[%c0_1, %c0_2] : memref<4x512xf32, #tpu.memory_space<vmem>>, vector<4x512xf32>
    tpu.vector_store %arg2[%c0_1, %c0_2], %2 {strides = array<i32>} : memref<4x512xf32, #tpu.memory_space<vmem>>, vector<4x512xf32>,
    return
  }
  func.func @transform_0(%arg0: i32) -> (i32, i32) {
    %c0_i32 = arith.constant 0 : i32
    %c0_i32_0 = arith.constant 0 : i32
    return %arg0, %c0_i32 : i32, i32
  }
  func.func @transform_1(%arg0: i32) -> (i32, i32) {
    %c0_i32 = arith.constant 0 : i32
    %c0_i32_0 = arith.constant 0 : i32
    return %arg0, %c0_i32 : i32, i32
  }
}

</mosaic_0001>

<llo_original>
// kernel: tpu_custom_call.1
$region0: #{tpu_custom_call.1}
  #allocation0 [shape = 'u32[]', space=smem, size = 0x4, offset = 0x4, fixed_abs, tag = 'smem constant byte address 0x4 - core index']
  #allocation1 [shape = 'u32[144,128]{1,0:T(1,128)}', space=vmem, size = 0x12000, scoped, tag = 'internal scratch']
  %s0 = inlined_call_operand.hbm [shape: f32[4,512], index: 0, kind: input, shape index: {}]
  %s1 = inlined_call_operand.hbm [shape: f32[4,512], index: 1, kind: output, shape index: {}]
  %s2 = sld [smem:[#allocation0]]
  $region18: #{tpu_custom_call.1} parent=0
    _
  %s4 = ssub.s32 1, %s2
  %s5 = scalar_select 0, %s4, %s2
  $region1: #{tpu_custom_call.1} parent=0
    #allocation2 [shape = 'u8[8192]{0}', space=vmem, size = 0x2000, scoped, tag = 'input window, operand 0, single buffered']
    #allocation3 [shape = 's32[1]{0}', space=sflag, size = 0x4, scoped, tag = 'scoped memory for tpu_custom_call.1']
    #allocation4 [shape = 's32[1]{0}', space=sflag, size = 0x4, scoped, tag = 'scoped memory for tpu_custom_call.1']
    #allocation5 [shape = 'u8[8192]{0}', space=vmem, size = 0x2000, scoped, tag = 'output window, operand 0, single buffered']
    %6 = vsyncpa [#allocation3], 0
    %7 = vsyncpa [#allocation4], 0
    // Predicated region
    $region2: #{tpu_custom_call.1} parent=1 // pred_check
      _
    $region3: #{tpu_custom_call.1} parent=1 // pred_check_branch
      %9 = sbr.rel (0) target = $region5
    $region4: #{tpu_custom_call.1} parent=1 // pred_region
      %s11 = ssub.s32 256, 256
      %12 = vsyncadd [#allocation3], %s11
      %s14 = sshll.u32 [#allocation2], 4
      %s15 = int_to_ptr.vmem [resolvable:$true] %s14
      %17 = dma.hbm_to_vmem [thread:$0]  %s0, 256, %s15, [#allocation3]
    $region5: #{tpu_custom_call.1} parent=1 // pred_fallthru
      _
    // Predicated region
    $region6: #{tpu_custom_call.1} parent=1 // pred_check
      _
    $region7: #{tpu_custom_call.1} parent=1 // pred_check_branch
      %19 = sbr.rel (0) target = $region9
    $region8: #{tpu_custom_call.1} parent=1 // pred_region
      %20 = dma.done [#allocation3], 256
    $region9: #{tpu_custom_call.1} parent=1 // pred_fallthru
      _
    %v21 = vld [vmem:[#allocation2] sm:$0xff]
    %v22 = vld [vmem:[#allocation2 + $0x8] sm:$0xff]
    %v23 = vlog2.pop %v21
    %v24 = vmul.f32 %v23, 0.6931472
    %v25 = vlog2.pop %v22
    %v26 = vmul.f32 %v25, 0.6931472
    %v27 = vlog2.pop %v24
    %v28 = vmul.f32 %v27, 0.6931472
    %v29 = vlog2.pop %v26
    %v30 = vmul.f32 %v29, 0.6931472
    %31 = vst [vmem:[#allocation5] sm:$0xff] %v28
    %32 = vst [vmem:[#allocation5 + $0x8] sm:$0xff] %v30
    // Predicated region
    $region10: #{tpu_custom_call.1} parent=1 // pred_check
      _
    $region11: #{tpu_custom_call.1} parent=1 // pred_check_branch
      %34 = sbr.rel (0) target = $region13
    $region12: #{tpu_custom_call.1} parent=1 // pred_region
      %s36 = ssub.s32 256, 256
      %37 = vsyncadd [#allocation4], %s36
      %s39 = sshll.u32 [#allocation5], 4
      %s40 = int_to_ptr.vmem [resolvable:$true] %s39
      %42 = dma.vmem_to_hbm [thread:$0]  %s40, 256, %s1, [#allocation4]
    $region13: #{tpu_custom_call.1} parent=1 // pred_fallthru
      _
    // Predicated region
    $region14: #{tpu_custom_call.1} parent=1 // pred_check
      _
    $region15: #{tpu_custom_call.1} parent=1 // pred_check_branch
      %44 = sbr.rel (0) target = $region17
    $region16: #{tpu_custom_call.1} parent=1 // pred_region
      %45 = dma.done [#allocation4], 256
    $region17: #{tpu_custom_call.1} parent=1 // pred_fallthru
      _
    %46 = vsyncpa [#allocation3], 1
    %47 = vsyncpa [#allocation4], 1

</llo_original>
